<compile_context>
chip_gen: v7x
topology: tpu7x:2x2x1
jax: 0.10.0
libtpu: 0.0.40
codegen_flags: <defaults>
</compile_context>

<pallas_src>
import functools
import math

import jax
import jax.numpy as jnp
from jax import lax
from jax.experimental import pallas as pl
from jax.experimental.pallas import tpu as pltpu


def make_pos_embedding(emb_size, maxlen=5000, dtype=jnp.float32):
    """Deterministic buffer construction, mirrors PositionalEncoding.__init__."""
    den = jnp.exp(-jnp.arange(0, emb_size, 2, dtype=dtype) * math.log(10000.0) / emb_size)
    pos = jnp.arange(0, maxlen, dtype=dtype).reshape(maxlen, 1)
    pe = jnp.zeros((maxlen, emb_size), dtype=dtype)
    pe = pe.at[:, 0::2].set(jnp.sin(pos * den))
    pe = pe.at[:, 1::2].set(jnp.cos(pos * den))
    return pe  # (maxlen, emb_size)


def _pos_enc_kernel(x_ref, pe_ref, o_ref, *, R, C, TR, TB,
                    thr32, inv_keep, apply_dropout, seed_mix):
    # x_ref / o_ref: (TB, TR, C) block; pe_ref: (TR, C) block shared over batch.
    cdt = jnp.float32 if apply_dropout else o_ref.dtype
    # Single 3-D add: the (TR, C) -> (TB, TR, C) broadcast is issued once per grid
    # step (no per-batch Python unroll, no replicated hash graph).
    val = x_ref[...].astype(cdt) + pe_ref[...].astype(cdt)[None, :, :]

    if apply_dropout:
        shp = val.shape
        rt = pl.program_id(0)                      # row-tile index  (outer axis)
        bt = pl.program_id(1)                      # batch-tile index (inner axis)
        # Counter = global flat element index -> independent streams regardless of
        # tiling. Built once for the whole 3-D block.
        b_abs = (bt * TB).astype(jnp.uint32) + lax.broadcasted_iota(jnp.uint32, shp, 0)
        r_abs = (rt * TR).astype(jnp.uint32) + lax.broadcasted_iota(jnp.uint32, shp, 1)
        c_abs = lax.broadcasted_iota(jnp.uint32, shp, 2)
        h = (b_abs * jnp.uint32(R) + r_abs) * jnp.uint32(C) + c_abs + jnp.uint32(seed_mix)
        # Trimmed 2-round xorshift-multiply mix (VALU only; adequate for dropout).
        h = h ^ (h >> 16)
        h = h * jnp.uint32(0x21F0AAAD)
        h = h ^ (h >> 15)
        h = h * jnp.uint32(0x735A2D97)
        # Full 32-bit threshold compare (no extra shift); precomputed 1/(1-p) scale.
        keep = h >= jnp.uint32(thr32)
        val = jnp.where(keep, val * jnp.float32(inv_keep), jnp.float32(0.0))

    o_ref[...] = val.astype(o_ref.dtype)


def positional_encoding_forward(x, pos_embedding, dropout_p=0.1, train=False, seed=0):
    """x: (B, S, E). Returns dropout(x + pos_embedding[:S]) with module semantics."""
    if pos_embedding.ndim == 3:                    # accept the (1, maxlen, E) buffer too
        pos_embedding = pos_embedding[0]
    B, S, E = x.shape
    # PyTorch adds a float32 buffer to the (possibly lower-precision) embedding, so
    # the result dtype is the promoted dtype.
    out_dtype = jnp.promote_types(x.dtype, pos_embedding.dtype)
    pe = pos_embedding[:S].astype(out_dtype)       # (S, E)
    N = S * E

    x_item = jnp.dtype(x.dtype).itemsize
    o_item = jnp.dtype(out_dtype).itemsize
    itemsize = max(x_item, o_item)                 # conservative for block sizing
    min_item = min(x_item, o_item)
    sub = {4: 8, 2: 16, 1: 32}.get(min_item, 8)    # sublane granularity

    # ---- lane-dense per-batch 2-D view (R, C); pad the flat slab if needed -------
    if E % 128 == 0:
        R, C, pad = S, E, 0
        x3, pe3 = x, pe
    else:
        N_pad = ((N + 127) // 128) * 128
        pad = N_pad - N
        cands = [c for c in range(128, min(N_pad, 8192) + 1, 128) if N_pad % c == 0]
        dense = [c for c in cands if (N_pad // c) % 8 == 0]    # prefer sublane-dense
        C = max(dense) if dense else max(cands)
        R = N_pad // C
        x2 = x.reshape(B, N)
        pe2 = pe.reshape(N)
        if pad:
            x2 = jnp.pad(x2, ((0, 0), (0, pad)))
            pe2 = jnp.pad(pe2, (0, pad))
        x3 = x2.reshape(B, R, C)
        pe3 = pe2.reshape(R, C)

    # ---- tile sizing: ~4 MiB per block buffer; pack batches when row tiles are
    # small so the grid-step count (and its ~0.35 us/step overhead) shrinks --------
    TARGET = 4 << 20
    bytes_per_row = C * itemsize
    rows_target = max(1, TARGET // bytes_per_row)
    if R <= rows_target:
        TR = R
        TB = max(1, min(B, TARGET // max(1, R * bytes_per_row)))
    else:
        TR = max(sub, (rows_target // sub) * sub)
        TB = 1

    # ---- v7x: make sure a non-tiny problem keeps >= 2 grid steps so both
    # TensorCores get work under ("parallel", "parallel") ---------------------------
    total_bytes = B * R * C * itemsize
    grid_r, grid_b = pl.cdiv(R, TR), pl.cdiv(B, TB)
    if grid_r * grid_b < 2 and total_bytes > (2 << 20):
        if TB > 1:
            TB = pl.cdiv(TB, 2)
        elif R > sub:
            TR = max(sub, ((TR // 2) // sub) * sub)
        grid_r, grid_b = pl.cdiv(R, TR), pl.cdiv(B, TB)

    # ---- dropout constants --------------------------------------------------------
    p = min(max(float(dropout_p), 0.0), 1.0)
    apply_dropout = bool(train) and p > 0.0
    thr32 = min(int(round(p * (1 << 32))), (1 << 32) - 1)   # keep iff u32 >= thr32
    inv_keep = (1.0 / (1.0 - p)) if p < 1.0 else 0.0
    seed_mix = (int(seed) * 0x9E3779B9 + 0x85EBCA6B) & 0xFFFFFFFF

    kernel = functools.partial(
        _pos_enc_kernel, R=R, C=C, TR=TR, TB=TB,
        thr32=thr32, inv_keep=inv_keep, apply_dropout=apply_dropout, seed_mix=seed_mix)

    # Row-tile axis OUTER, batch axis INNER: the pe block index is constant over the
    # inner batch loop, so pe is fetched once per row tile (S*E bytes total).
    grid = (grid_r, grid_b)

    y = pl.pallas_call(
        kernel,
        out_shape=jax.ShapeDtypeStruct((B, R, C), out_dtype),
        grid=grid,
        in_specs=[
            pl.BlockSpec((TB, TR, C), lambda r, b: (b, r, 0)),   # x block
            pl.BlockSpec((TR, C), lambda r, b: (r, 0)),          # shared pe block
        ],
        out_specs=pl.BlockSpec((TB, TR, C), lambda r, b: (b, r, 0)),
        compiler_params=pltpu.CompilerParams(
            dimension_semantics=("parallel", "parallel"),  # let v7x split both axes
            # Double-buffered x/pe/out at <=4 MiB blocks is <~24 MiB; 48 MiB limit is
            # safe on v5e/v6e (128 MiB physical) and v7x (64 MiB per TC).
            vmem_limit_bytes=48 * 1024 * 1024,
        ),
    )(x3, pe3)

    if E % 128 == 0:
        return y
    return y.reshape(B, R * C)[:, :N].reshape(B, S, E)


if __name__ == "__main__":
    # Small shapes consistent with the module: batch=2, seq=8, emb_size=32.
    B, S, E = 2, 8, 32
    maxlen = 64
    dropout_p = 0.1

    key = jax.random.PRNGKey(0)
    x = jax.random.normal(key, (B, S, E), dtype=jnp.float32)
    pos_embedding = make_pos_embedding(E, maxlen=maxlen)

    # Eval-mode forward (dropout is identity), matching module.eval() semantics.
    out = positional_encoding_forward(x, pos_embedding, dropout_p=dropout_p, train=False)
    out = jax.block_until_ready(out)

    ref = x + pos_embedding[None, :S, :]
    assert out.shape == (B, S, E) and out.dtype == x.dtype
    assert jnp.allclose(out, ref, atol=1e-6), "eval-mode mismatch vs reference"

    # Train-mode (dropout) path: every kept element must equal (x + pe) / (1 - p),
    # dropped elements are exactly zero.
    out_train = positional_encoding_forward(
        x, pos_embedding, dropout_p=dropout_p, train=True, seed=1234)
    out_train = jax.block_until_ready(out_train)
    scaled = ref / (1.0 - dropout_p)
    nonzero_ok = jnp.all(jnp.where(out_train == 0.0, True,
                                   jnp.abs(out_train - scaled) < 1e-4))
    assert bool(nonzero_ok), "train-mode kept elements should equal (x+pe)/(1-p)"

    print("KERNEL_OK")
</pallas_src>

<mosaic_0001>
module attributes {stable_mosaic.version = 11 : i64} {
  func.func @_pos_enc_kernel(%arg0: i32, %arg1: i32, %arg2: memref<2x1x256xf32, #tpu.memory_space<vmem>>, %arg3: memref<1x256xf32, #tpu.memory_space<vmem>>, %arg4: memref<2x1x256xf32, #tpu.memory_space<vmem>>) attributes {dimension_semantics = [#tpu.dimension_semantics<parallel>, #tpu.dimension_semantics<parallel>], iteration_bounds = array<i64: 1, 1>, scalar_prefetch = 0 : i64, scratch_operands = 0 : i64, tpu.core_type = #tpu.core_type<tc>, window_params = [{transform_indices = @transform_0, window_bounds = array<i64: 2, 1, 256>}, {transform_indices = @transform_1, window_bounds = array<i64: 1, 256>}, {transform_indices = @transform_2, window_bounds = array<i64: 2, 1, 256>}]} {
    %c0 = arith.constant 0 : index
    %c0_0 = arith.constant 0 : index
    %c0_1 = arith.constant 0 : index
    %0 = vector.load %arg2[%c0, %c0_0, %c0_1] : memref<2x1x256xf32, #tpu.memory_space<vmem>>, vector<2x1x256xf32>
    %c0_2 = arith.constant 0 : index
    %c0_3 = arith.constant 0 : index
    %1 = vector.load %arg3[%c0_2, %c0_3] : memref<1x256xf32, #tpu.memory_space<vmem>>, vector<1x256xf32>
    %2 = vector.shape_cast %1 : vector<1x256xf32> to vector<1x1x256xf32>
    %3 = vector.broadcast %2 : vector<1x1x256xf32> to vector<2x1x256xf32>
    %4 = arith.addf %0, %3 : vector<2x1x256xf32>
    %c0_4 = arith.constant 0 : index
    %c0_5 = arith.constant 0 : index
    %c0_6 = arith.constant 0 : index
    %5 = vector.load %arg4[%c0_4, %c0_5, %c0_6] : memref<2x1x256xf32, #tpu.memory_space<vmem>>, vector<2x1x256xf32>
    tpu.vector_store %arg4[%c0_4, %c0_5, %c0_6], %4 {strides = array<i32>} : memref<2x1x256xf32, #tpu.memory_space<vmem>>, vector<2x1x256xf32>,
    return
  }
  func.func @transform_0(%arg0: i32, %arg1: i32) -> (i32, i32, i32) {
    %c0_i32 = arith.constant 0 : i32
    %c0_i32_0 = arith.constant 0 : i32
    return %arg1, %arg0, %c0_i32 : i32, i32, i32
  }
  func.func @transform_1(%arg0: i32, %arg1: i32) -> (i32, i32) {
    %c0_i32 = arith.constant 0 : i32
    %c0_i32_0 = arith.constant 0 : i32
    return %arg0, %c0_i32 : i32, i32
  }
  func.func @transform_2(%arg0: i32, %arg1: i32) -> (i32, i32, i32) {
    %c0_i32 = arith.constant 0 : i32
    %c0_i32_0 = arith.constant 0 : i32
    return %arg1, %arg0, %c0_i32 : i32, i32, i32
  }
}

</mosaic_0001>

<llo_original>
// kernel: tpu_custom_call.1
$region0: #{tpu_custom_call.1}
  #allocation0 [shape = 'u32[]', space=smem, size = 0x4, offset = 0x4, fixed_abs, tag = 'smem constant byte address 0x4 - core index']
  #allocation1 [shape = 'u32[144,128]{1,0:T(1,128)}', space=vmem, size = 0x12000, scoped, tag = 'internal scratch']
  %s0 = inlined_call_operand.hbm [shape: f32[2,1,256], index: 0, kind: input, shape index: {}]
  %s1 = inlined_call_operand.vmem [shape: f32[1,256], index: 1, kind: input, shape index: {}]
  %s2 = inlined_call_operand.hbm [shape: f32[2,1,256], index: 2, kind: output, shape index: {}]
  %s3 = sld [smem:[#allocation0]]
  $region22: #{tpu_custom_call.1} parent=0
    _
  %s5 = ssub.s32 1, %s3
  %s6 = scalar_select 0, %s5, %s3
  $region1: #{tpu_custom_call.1} parent=0
    #allocation2 [shape = 'u8[2048]{0}', space=vmem, size = 0x800, scoped, tag = 'input window, operand 0, single buffered']
    #allocation3 [shape = 's32[1]{0}', space=sflag, size = 0x4, scoped, tag = 'scoped memory for tpu_custom_call.1']
    #allocation4 [shape = 's32[1]{0}', space=sflag, size = 0x4, scoped, tag = 'scoped memory for tpu_custom_call.1']
    #allocation5 [shape = 'u8[2048]{0}', space=vmem, size = 0x800, scoped, tag = 'output window, operand 0, single buffered']
    %7 = vsyncpa [#allocation3], 0
    %8 = vsyncpa [#allocation4], 0
    // Predicated region
    $region2: #{tpu_custom_call.1} parent=1 // pred_check
      _
    $region3: #{tpu_custom_call.1} parent=1 // pred_check_branch
      %10 = sbr.rel (0) target = $region5
    $region4: #{tpu_custom_call.1} parent=1 // pred_region
      %s12 = ssub.s32 64, 64
      %13 = vsyncadd [#allocation3], %s12
      %s14 = sshll.u32 [#allocation2], 4
      %s15 = int_to_ptr.vmem [resolvable:$true] %s14
      %20 = dma.hbm_to_vmem [thread:$0]  %s0, 64, %s15, [#allocation3], 32, 32, 2
    $region5: #{tpu_custom_call.1} parent=1 // pred_fallthru
      _
    // Predicated region
    $region6: #{tpu_custom_call.1} parent=1 // pred_check
      _
    $region7: #{tpu_custom_call.1} parent=1 // pred_check_branch
      %22 = sbr.rel (0) target = $region9
    $region8: #{tpu_custom_call.1} parent=1 // pred_region
      _
    $region9: #{tpu_custom_call.1} parent=1 // pred_fallthru
      _
    // Predicated region
    $region10: #{tpu_custom_call.1} parent=1 // pred_check
      _
    $region11: #{tpu_custom_call.1} parent=1 // pred_check_branch
      %24 = sbr.rel (0) target = $region13
    $region12: #{tpu_custom_call.1} parent=1 // pred_region
      %25 = dma.done [#allocation3], 64
    $region13: #{tpu_custom_call.1} parent=1 // pred_fallthru
      _
    %v26 = vld [vmem:[#allocation2] sm:$0x3]
    %v27 = vld [vmem:[#allocation2 + $0x2] sm:$0x3]
    %v28 = vld [vmem:[%s1] sm:$0x3]
    %v29 = vadd.f32 %v26, %v28
    %v30 = vadd.f32 %v27, %v28
    %v31 = vlaneseq
    %vm32 = vcmp.ge.s32.totalorder %v31, 0
    %vm33 = vcmp.lt.s32.totalorder %v31, 256
    %vm34 = vmand %vm32, %vm33
    %35 = vst.msk [vmem:[#allocation5] sm:$0x3] %vm34, %v29
    %36 = vst.msk [vmem:[#allocation5 + $0x2] sm:$0x3] %vm34, %v30
    // Predicated region
    $region14: #{tpu_custom_call.1} parent=1 // pred_check
      _
    $region15: #{tpu_custom_call.1} parent=1 // pred_check_branch
      %38 = sbr.rel (0) target = $region17
    $region16: #{tpu_custom_call.1} parent=1 // pred_region
      %s40 = ssub.s32 64, 64
      %41 = vsyncadd [#allocation4], %s40
      %s42 = sshll.u32 [#allocation5], 4
      %s43 = int_to_ptr.vmem [resolvable:$true] %s42
      %48 = dma.vmem_to_hbm [thread:$0]  %s43, 64, %s2, [#allocation4], 32, 32, 2
    $region17: #{tpu_custom_call.1} parent=1 // pred_fallthru
      _
    // Predicated region
    $region18: #{tpu_custom_call.1} parent=1 // pred_check
      _
    $region19: #{tpu_custom_call.1} parent=1 // pred_check_branch
      %50 = sbr.rel (0) target = $region21
    $region20: #{tpu_custom_call.1} parent=1 // pred_region
      %51 = dma.done [#allocation4], 64
    $region21: #{tpu_custom_call.1} parent=1 // pred_fallthru
      _
    %52 = vsyncpa [#allocation3], 1
    %53 = vsyncpa [#allocation4], 1

</llo_original>
